<compile_context>
chip_gen: v5e
topology: v5e:2x2
jax: 0.10.0
libtpu: 0.0.40
codegen_flags: <defaults>
</compile_context>

<pallas_src>
import jax
import jax.numpy as jnp
from jax import lax
from jax.experimental import pallas as pl
from jax.experimental.pallas import tpu as pltpu


def _round_up(x, m):
    return ((x + m - 1) // m) * m


def _masklm_mlp_kernel(x_ref, w1_ref, b1_ref, g_ref, bt_ref, w2_ref, b2_ref,
                       o_ref, h_scr):
    """Fused Linear -> ReLU -> LayerNorm -> Linear for one (token, vocab) tile."""
    j = pl.program_id(1)

    # Hidden activation only depends on the token tile: compute it once per
    # token tile (inner vocab index j == 0) and reuse it from VMEM scratch for
    # the remaining vocab tiles of the same token tile.
    @pl.when(j == 0)
    def _():
        x = x_ref[...]                                      # (TN, Din)
        # W1 stays in PyTorch (Dh, Din) layout (lane-dense in Din); contract
        # over Din on both operands -> (TN, Dh) with f32 MXU accumulation.
        h = lax.dot_general(
            x, w1_ref[...],
            dimension_numbers=(((1,), (1,)), ((), ())),
            preferred_element_type=jnp.float32)
        h = jnp.maximum(h + b1_ref[...].astype(jnp.float32), 0.0)   # bias + ReLU
        # LayerNorm over the hidden dim (PyTorch: eps=1e-5, biased variance).
        mean = jnp.mean(h, axis=-1, keepdims=True)
        c = h - mean
        var = jnp.mean(c * c, axis=-1, keepdims=True)
        inv = lax.rsqrt(var + 1e-5)
        h_scr[...] = (c * inv) * g_ref[...].astype(jnp.float32) \
                     + bt_ref[...].astype(jnp.float32)

    # Output projection for this vocab tile: W2 stays in (V, Dh) layout,
    # contract over Dh -> (TN, TV).
    ln = h_scr[...].astype(w2_ref.dtype)
    y = lax.dot_general(
        ln, w2_ref[...],
        dimension_numbers=(((1,), (1,)), ((), ())),
        preferred_element_type=jnp.float32)
    o_ref[...] = (y + b2_ref[...].astype(jnp.float32)).astype(o_ref.dtype)


def mask_lm_forward(X, pred_positions, w1, b1, gamma, beta, w2, b2,
                    *, tile_tokens=128, tile_vocab=512):
    """BERT MaskLM forward.

    X:              (B, S, Din)  encoder output
    pred_positions: (B, P) int   positions to predict
    w1, b1:         (Dh, Din), (Dh,)   first Linear (PyTorch layout)
    gamma, beta:    (Dh,), (Dh,)       LayerNorm affine params
    w2, b2:         (V, Dh), (V,)      output Linear (PyTorch layout)
    returns:        (B, P, V)
    """
    B, S, Din = X.shape
    P = pred_positions.shape[1]
    Dh = w1.shape[0]
    V = w2.shape[0]
    N = B * P
    dt = X.dtype

    # ---- Gather the masked token vectors (plain-JAX glue indexing). ---------
    # TODO(synk): pull the gather in-kernel via scalar-prefetched indices +
    # manual DMA if profiling ever shows it exposed; its HBM traffic is tiny
    # next to the W2 / output traffic of the MLP below.
    flat_pos = pred_positions.reshape(-1).astype(jnp.int32)
    batch_idx = jnp.repeat(jnp.arange(B, dtype=jnp.int32), P)
    masked = X[batch_idx, flat_pos]                          # (N, Din)

    # ---- Pad token / vocab dims to tile multiples so every block is full. ---
    tn = min(tile_tokens, _round_up(N, 8))
    n_pad = _round_up(N, tn)
    tv = min(tile_vocab, _round_up(V, 128))
    v_pad = _round_up(V, tv)

    masked = jnp.pad(masked, ((0, n_pad - N), (0, 0)))
    w1 = w1.astype(dt)
    w2 = jnp.pad(w2.astype(dt), ((0, v_pad - V), (0, 0)))
    b1_2d = b1.reshape(1, Dh).astype(jnp.float32)
    g_2d = gamma.reshape(1, Dh).astype(jnp.float32)
    bt_2d = beta.reshape(1, Dh).astype(jnp.float32)
    b2_2d = jnp.pad(b2.astype(jnp.float32), (0, v_pad - V)).reshape(1, v_pad)

    grid = (n_pad // tn, v_pad // tv)

    itemsize = jnp.dtype(dt).itemsize
    flops = 2 * n_pad * Din * Dh + 2 * n_pad * Dh * v_pad
    bytes_accessed = (masked.size + w1.size + w2.size + n_pad * v_pad) * itemsize

    out = pl.pallas_call(
        _masklm_mlp_kernel,
        out_shape=jax.ShapeDtypeStruct((n_pad, v_pad), dt),
        grid_spec=pltpu.PrefetchScalarGridSpec(
            num_scalar_prefetch=0,
            grid=grid,
            in_specs=[
                pl.BlockSpec((tn, Din), lambda i, j: (i, 0)),   # token tile i
                pl.BlockSpec((Dh, Din), lambda i, j: (0, 0)),   # W1 (resident)
                pl.BlockSpec((1, Dh), lambda i, j: (0, 0)),     # b1
                pl.BlockSpec((1, Dh), lambda i, j: (0, 0)),     # gamma
                pl.BlockSpec((1, Dh), lambda i, j: (0, 0)),     # beta
                pl.BlockSpec((tv, Dh), lambda i, j: (j, 0)),    # W2 vocab tile j
                pl.BlockSpec((1, tv), lambda i, j: (0, j)),     # b2 vocab tile j
            ],
            out_specs=pl.BlockSpec((tn, tv), lambda i, j: (i, j)),
            scratch_shapes=[pltpu.VMEM((tn, Dh), jnp.float32)],
        ),
        compiler_params=pltpu.CompilerParams(
            dimension_semantics=("parallel", "arbitrary")),
        cost_estimate=pl.CostEstimate(
            flops=flops, transcendentals=n_pad, bytes_accessed=bytes_accessed),
    )(masked, w1, b1_2d, g_2d, bt_2d, w2, b2_2d)

    return out[:N, :V].reshape(B, P, V)


if __name__ == "__main__":
    key = jax.random.PRNGKey(0)
    ks = jax.random.split(key, 7)

    # Small shapes consistent with the module's forward.
    batch, seq_len = 2, 8
    num_inputs, num_hiddens, vocab_size = 32, 32, 256

    X = jax.random.normal(ks[0], (batch, seq_len, num_inputs), dtype=jnp.float32)
    pred_positions = jnp.array([[1, 5, 2], [6, 1, 5]], dtype=jnp.int32)

    # Deterministic synthetic parameters (PyTorch nn.Linear / LayerNorm shapes).
    bound1 = 1.0 / jnp.sqrt(num_inputs)
    w1 = jax.random.uniform(ks[1], (num_hiddens, num_inputs), minval=-bound1,
                            maxval=bound1, dtype=jnp.float32)
    b1 = jax.random.uniform(ks[2], (num_hiddens,), minval=-bound1, maxval=bound1,
                            dtype=jnp.float32)
    gamma = (jnp.ones((num_hiddens,), jnp.float32)
             + 0.1 * jax.random.normal(ks[3], (num_hiddens,), dtype=jnp.float32))
    beta = 0.1 * jax.random.normal(ks[4], (num_hiddens,), dtype=jnp.float32)
    bound2 = 1.0 / jnp.sqrt(num_hiddens)
    w2 = jax.random.uniform(ks[5], (vocab_size, num_hiddens), minval=-bound2,
                            maxval=bound2, dtype=jnp.float32)
    b2 = jax.random.uniform(ks[6], (vocab_size,), minval=-bound2, maxval=bound2,
                            dtype=jnp.float32)

    out = mask_lm_forward(X, pred_positions, w1, b1, gamma, beta, w2, b2,
                          tile_tokens=128, tile_vocab=128)
    jax.block_until_ready(out)

    # Pure-JAX reference of the PyTorch forward.
    P = pred_positions.shape[1]
    bidx = jnp.repeat(jnp.arange(batch), P)
    masked_ref = X[bidx, pred_positions.reshape(-1)].reshape(batch, P, num_inputs)
    h = jnp.maximum(masked_ref @ w1.T + b1, 0.0)
    mean = h.mean(-1, keepdims=True)
    var = ((h - mean) ** 2).mean(-1, keepdims=True)
    ln = (h - mean) / jnp.sqrt(var + 1e-5) * gamma + beta
    ref = ln @ w2.T + b2

    assert out.shape == (batch, P, vocab_size)
    err = float(jnp.abs(out - ref).max())
    assert jnp.allclose(out, ref, atol=1e-3, rtol=1e-3), err

    print("KERNEL_OK")
</pallas_src>

<mosaic_0001>
module attributes {stable_mosaic.version = 11 : i64} {
  func.func @_masklm_mlp_kernel(%arg0: i32, %arg1: i32, %arg2: memref<8x32xf32, #tpu.memory_space<vmem>>, %arg3: memref<32x32xf32, #tpu.memory_space<vmem>>, %arg4: memref<1x32xf32, #tpu.memory_space<vmem>>, %arg5: memref<1x32xf32, #tpu.memory_space<vmem>>, %arg6: memref<1x32xf32, #tpu.memory_space<vmem>>, %arg7: memref<128x32xf32, #tpu.memory_space<vmem>>, %arg8: memref<1x128xf32, #tpu.memory_space<vmem>>, %arg9: memref<8x128xf32, #tpu.memory_space<vmem>>, %arg10: memref<8x32xf32, #tpu.memory_space<vmem>>) attributes {dimension_semantics = [#tpu.dimension_semantics<parallel>, #tpu.dimension_semantics<arbitrary>], iteration_bounds = array<i64: 1, 2>, scalar_prefetch = 0 : i64, scratch_operands = 1 : i64, tpu.core_type = #tpu.core_type<tc>, window_params = [{transform_indices = @transform_0, window_bounds = array<i64: 8, 32>}, {pipeline_mode = #tpu.pipeline_mode<synchronous>, transform_indices = @transform_1, window_bounds = array<i64: 32, 32>}, {pipeline_mode = #tpu.pipeline_mode<synchronous>, transform_indices = @transform_2, window_bounds = array<i64: 1, 32>}, {pipeline_mode = #tpu.pipeline_mode<synchronous>, transform_indices = @transform_3, window_bounds = array<i64: 1, 32>}, {pipeline_mode = #tpu.pipeline_mode<synchronous>, transform_indices = @transform_4, window_bounds = array<i64: 1, 32>}, {transform_indices = @transform_5, window_bounds = array<i64: 128, 32>}, {transform_indices = @transform_6, window_bounds = array<i64: 1, 128>}, {transform_indices = @transform_7, window_bounds = array<i64: 8, 128>}]} {
    %c0_i32 = arith.constant 0 : i32
    %0 = arith.cmpi eq, %arg1, %c0_i32 : i32
    %1 = arith.extui %0 : i1 to i32
    %c0_i32_0 = arith.constant 0 : i32
    %2 = arith.cmpi ne, %1, %c0_i32_0 : i32
    scf.if %2 {
      %c0_8 = arith.constant 0 : index
      %c0_9 = arith.constant 0 : index
      %10 = vector.load %arg2[%c0_8, %c0_9] : memref<8x32xf32, #tpu.memory_space<vmem>>, vector<8x32xf32>
      %c0_10 = arith.constant 0 : index
      %c0_11 = arith.constant 0 : index
      %11 = vector.load %arg3[%c0_10, %c0_11] : memref<32x32xf32, #tpu.memory_space<vmem>>, vector<32x32xf32>
      %cst_12 = arith.constant dense<0.000000e+00> : vector<8x32xf32>
      %12 = tpu.matmul %10, %11, %cst_12 {dimension_numbers = #tpu.dot_dimension_numbers<[1], [1], [0], [0], [0, 0, 1, 0], [], []>} : vector<8x32xf32>, vector<32x32xf32>, vector<8x32xf32> -> vector<8x32xf32>
      %c0_13 = arith.constant 0 : index
      %c0_14 = arith.constant 0 : index
      %13 = vector.load %arg4[%c0_13, %c0_14] : memref<1x32xf32, #tpu.memory_space<vmem>>, vector<1x32xf32>
      %14 = vector.broadcast %13 : vector<1x32xf32> to vector<8x32xf32>
      %15 = arith.addf %12, %14 : vector<8x32xf32>
      %cst_15 = arith.constant 0.000000e+00 : f32
      %16 = vector.broadcast %cst_15 : f32 to vector<8x32xf32>
      %17 = arith.maximumf %15, %16 : vector<8x32xf32>
      %cst_16 = arith.constant dense<0.000000e+00> : vector<8xf32>
      %18 = vector.multi_reduction <add>, %17, %cst_16 [1] : vector<8x32xf32> to vector<8xf32>
      %19 = vector.shape_cast %18 : vector<8xf32> to vector<8x1xf32>
      %cst_17 = arith.constant 3.200000e+01 : f32
      %20 = vector.broadcast %cst_17 : f32 to vector<8x1xf32>
      %21 = arith.divf %19, %20 : vector<8x1xf32>
      %22 = vector.broadcast %21 : vector<8x1xf32> to vector<8x32xf32>
      %23 = arith.subf %17, %22 : vector<8x32xf32>
      %24 = arith.mulf %23, %23 : vector<8x32xf32>
      %cst_18 = arith.constant dense<0.000000e+00> : vector<8xf32>
      %25 = vector.multi_reduction <add>, %24, %cst_18 [1] : vector<8x32xf32> to vector<8xf32>
      %26 = vector.shape_cast %25 : vector<8xf32> to vector<8x1xf32>
      %cst_19 = arith.constant 3.200000e+01 : f32
      %27 = vector.broadcast %cst_19 : f32 to vector<8x1xf32>
      %28 = arith.divf %26, %27 : vector<8x1xf32>
      %cst_20 = arith.constant 9.99999974E-6 : f32
      %29 = vector.broadcast %cst_20 : f32 to vector<8x1xf32>
      %30 = arith.addf %28, %29 : vector<8x1xf32>
      %31 = math.rsqrt %30 : vector<8x1xf32>
      %32 = vector.broadcast %31 : vector<8x1xf32> to vector<8x32xf32>
      %33 = arith.mulf %23, %32 : vector<8x32xf32>
      %c0_21 = arith.constant 0 : index
      %c0_22 = arith.constant 0 : index
      %34 = vector.load %arg5[%c0_21, %c0_22] : memref<1x32xf32, #tpu.memory_space<vmem>>, vector<1x32xf32>
      %35 = vector.broadcast %34 : vector<1x32xf32> to vector<8x32xf32>
      %36 = arith.mulf %33, %35 : vector<8x32xf32>
      %c0_23 = arith.constant 0 : index
      %c0_24 = arith.constant 0 : index
      %37 = vector.load %arg6[%c0_23, %c0_24] : memref<1x32xf32, #tpu.memory_space<vmem>>, vector<1x32xf32>
      %38 = vector.broadcast %37 : vector<1x32xf32> to vector<8x32xf32>
      %39 = arith.addf %36, %38 : vector<8x32xf32>
      %c0_25 = arith.constant 0 : index
      %c0_26 = arith.constant 0 : index
      %40 = vector.load %arg10[%c0_25, %c0_26] : memref<8x32xf32, #tpu.memory_space<vmem>>, vector<8x32xf32>
      tpu.vector_store %arg10[%c0_25, %c0_26], %39 {strides = array<i32>} : memref<8x32xf32, #tpu.memory_space<vmem>>, vector<8x32xf32>,
    } else {
    }
    %c0 = arith.constant 0 : index
    %c0_1 = arith.constant 0 : index
    %3 = vector.load %arg10[%c0, %c0_1] : memref<8x32xf32, #tpu.memory_space<vmem>>, vector<8x32xf32>
    %c0_2 = arith.constant 0 : index
    %c0_3 = arith.constant 0 : index
    %4 = vector.load %arg7[%c0_2, %c0_3] : memref<128x32xf32, #tpu.memory_space<vmem>>, vector<128x32xf32>
    %cst = arith.constant dense<0.000000e+00> : vector<8x128xf32>
    %5 = tpu.matmul %3, %4, %cst {dimension_numbers = #tpu.dot_dimension_numbers<[1], [1], [0], [0], [0, 0, 1, 0], [], []>} : vector<8x32xf32>, vector<128x32xf32>, vector<8x128xf32> -> vector<8x128xf32>
    %c0_4 = arith.constant 0 : index
    %c0_5 = arith.constant 0 : index
    %6 = vector.load %arg8[%c0_4, %c0_5] : memref<1x128xf32, #tpu.memory_space<vmem>>, vector<1x128xf32>
    %7 = vector.broadcast %6 : vector<1x128xf32> to vector<8x128xf32>
    %8 = arith.addf %5, %7 : vector<8x128xf32>
    %c0_6 = arith.constant 0 : index
    %c0_7 = arith.constant 0 : index
    %9 = vector.load %arg9[%c0_6, %c0_7] : memref<8x128xf32, #tpu.memory_space<vmem>>, vector<8x128xf32>
    tpu.vector_store %arg9[%c0_6, %c0_7], %8 {strides = array<i32>} : memref<8x128xf32, #tpu.memory_space<vmem>>, vector<8x128xf32>,
    return
  }
  func.func @transform_0(%arg0: i32, %arg1: i32) -> (i32, i32) {
    %c0_i32 = arith.constant 0 : i32
    %c0_i32_0 = arith.constant 0 : i32
    return %arg0, %c0_i32 : i32, i32
  }
  func.func @transform_1(%arg0: i32, %arg1: i32) -> (i32, i32) {
    %c0_i32 = arith.constant 0 : i32
    %c0_i32_0 = arith.constant 0 : i32
    %c0_i32_1 = arith.constant 0 : i32
    return %c0_i32, %c0_i32_0 : i32, i32
  }
  func.func @transform_2(%arg0: i32, %arg1: i32) -> (i32, i32) {
    %c0_i32 = arith.constant 0 : i32
    %c0_i32_0 = arith.constant 0 : i32
    %c0_i32_1 = arith.constant 0 : i32
    return %c0_i32, %c0_i32_0 : i32, i32
  }
  func.func @transform_3(%arg0: i32, %arg1: i32) -> (i32, i32) {
    %c0_i32 = arith.constant 0 : i32
    %c0_i32_0 = arith.constant 0 : i32
    %c0_i32_1 = arith.constant 0 : i32
    return %c0_i32, %c0_i32_0 : i32, i32
  }
  func.func @transform_4(%arg0: i32, %arg1: i32) -> (i32, i32) {
    %c0_i32 = arith.constant 0 : i32
    %c0_i32_0 = arith.constant 0 : i32
    %c0_i32_1 = arith.constant 0 : i32
    return %c0_i32, %c0_i32_0 : i32, i32
  }
  func.func @transform_5(%arg0: i32, %arg1: i32) -> (i32, i32) {
    %c0_i32 = arith.constant 0 : i32
    %c0_i32_0 = arith.constant 0 : i32
    return %arg1, %c0_i32 : i32, i32
  }
  func.func @transform_6(%arg0: i32, %arg1: i32) -> (i32, i32) {
    %c0_i32 = arith.constant 0 : i32
    %c0_i32_0 = arith.constant 0 : i32
    return %c0_i32, %arg1 : i32, i32
  }
  func.func @transform_7(%arg0: i32, %arg1: i32) -> (i32, i32) {
    %c0_i32 = arith.constant 0 : i32
    return %arg0, %arg1 : i32, i32
  }
}

</mosaic_0001>

<llo_original>
// kernel: tpu_custom_call.1
$region0: #{tpu_custom_call.1}
  #allocation0 [shape = 'u32[]', space=smem, size = 0x4, offset = 0x4, fixed_abs, tag = 'smem constant byte address 0x4 - core index']
  #allocation1 [shape = 'u32[72,128]{1,0:T(1,128)}', space=vmem, size = 0x9000, scoped, tag = 'internal scratch']
  #allocation2 [shape = 'f32[8,32]{1,0:T(8,128)}', space=vmem, size = 0x1000, scoped, tag = 'scratch operand']
  %s0 = inlined_call_operand.vmem [shape: f32[8,32], index: 0, kind: input, shape index: {}]
  %s1 = inlined_call_operand.vmem [shape: f32[32,32], index: 1, kind: input, shape index: {}]
  %s2 = inlined_call_operand.vmem [shape: f32[1,32], index: 2, kind: input, shape index: {}]
  %s3 = inlined_call_operand.vmem [shape: f32[1,32], index: 3, kind: input, shape index: {}]
  %s4 = inlined_call_operand.vmem [shape: f32[1,32], index: 4, kind: input, shape index: {}]
  %s5 = inlined_call_operand.vmem [shape: f32[256,32], index: 5, kind: input, shape index: {}]
  %s6 = inlined_call_operand.vmem [shape: f32[1,256], index: 6, kind: input, shape index: {}]
  %s7 = inlined_call_operand.hbm [shape: f32[8,256], index: 7, kind: output, shape index: {}]
  %s8 = sld [smem:[#allocation0]]
  $region65: #{tpu_custom_call.1} parent=0
    _
  %s10 = ssub.s32 1, %s8
  %s11 = scalar_select 0, %s10, %s8
  $region1: #{tpu_custom_call.1} parent=0
    #allocation3 [shape = 'u8[8192]{0}', space=vmem, size = 0x2000, scoped, tag = 'output window, operand 0']
    #allocation4 [shape = 's32[2]{0}', space=sflag, size = 0x8, scoped, tag = 'scoped memory for tpu_custom_call.1']
    %12 = vsyncpa [#allocation4], 0
    %s13 = scalar_lea.sflag [#allocation4], 1
    %14 = vsyncpa %s13, 0
    loop: start=0, step=1, limit=4
    $region2: #{tpu_custom_call.1} parent=1 // loop_pre_header
      _
    $region3: #{tpu_custom_call.1} parent=1 // loop_header
      %s16 = sphi 0, %s20
      %p17 = scmp.ge.s32.totalorder %s16, 4
      %s23 = sphi 0, %s35
      %s24 = sphi 0, %s31
      %s25 = sphi 0, %s23
      %s26 = sphi 0, %s24
      %s27 = sphi 0, %s25
      %s28 = sphi 0, %s26
      %s38 = sphi 0, %s40
      %s41 = sphi 0, %s38
      %s42 = sphi 0, %s41
      %s58 = sphi 0, %s42
      %s62 = sphi 0, %s62
      %s64 = sphi 0, %s62
      %s65 = sphi 0, %s64
      %s79 = sphi 0, %s65
      %s83 = sphi 0, %s83
      %s85 = sphi 0, %s83
      %s86 = sphi 0, %s85
      %s100 = sphi 0, %s86
      %s104 = sphi 0, %s104
      %s106 = sphi 0, %s104
      %s107 = sphi 0, %s106
      %s121 = sphi 0, %s107
      %s125 = sphi 0, %s125
      %s127 = sphi 0, %s125
      %s128 = sphi 0, %s127
      %s142 = sphi 0, %s128
      %s148 = sphi 0, %s150
      %s151 = sphi 0, %s148
      %s152 = sphi 0, %s151
      %s168 = sphi 0, %s152
      %s174 = sphi 0, %s176
      %s177 = sphi 0, %s174
      %s178 = sphi 0, %s177
      %s194 = sphi 0, %s178
      %s202 = sphi 0, %s204
      %s205 = sphi 0, %s202
      %s206 = sphi 0, %s205
      %s222 = sphi 0, %s206
    $region4: #{tpu_custom_call.1} parent=1 // loop_header_branch
      %19 = sbr.rel (%p17) target = $region8
    $region5: #{tpu_custom_call.1} parent=1 // loop_body
      %s21 = ssub.s32 %s16, 1
      %s22 = ssub.s32 %s16, 2
      %s29 = sadd.s32 1, %s24
      %p30 = scmp.ge.s32.totalorder %s29, 2
      %s31 = scalar_select %p30, 0, %s29
      %s32 = sadd.s32 1, %s23
      %s33 = scalar_select %p30, %s32, %s23
      %p34 = scmp.ge.s32.totalorder %s33, 1
      %s35 = scalar_select %p34, 0, %s33
      %s36 = ssub.s32 %s23, %s35
      %p37 = scmp.eq.s32.totalorder %s36, 0
      %s39 = sadd.s32 %s38, 1
      %s40 = scalar_select %p37, %s38, %s39
      %p43 = pneg %p37
      %p44 = scmp.eq.s32.totalorder %s16, 1
      %p45 = por %p43, %p44
      %p46 = scmp.ne.s32.totalorder %s38, %s41
      %p47 = scmp.eq.s32.totalorder %s16, 0
      %p48 = por %p46, %p47
      %p49 = scmp.ne.s32.totalorder %s38, %s41
      %p50 = scmp.eq.s32.totalorder %s21, 1
      %p51 = por %p49, %p50
      %p52 = scmp.ne.s32.totalorder %s41, %s42
      %p53 = scmp.eq.s32.totalorder %s21, 0
      %p54 = por %p52, %p53
      %p55 = scmp.ne.s32.totalorder %s41, %s42
      %p56 = scmp.eq.s32.totalorder %s22, 1
      %p57 = por %p55, %p56
      %p59 = scmp.ne.s32.totalorder %s42, %s58
      %p60 = scmp.eq.s32.totalorder %s22, 0
      %p61 = por %p59, %p60
      %s63 = sadd.s32 %s62, 1
      %p66 = scmp.eq.s32.totalorder %s16, 1
      %p67 = scmp.ne.s32.totalorder %s62, %s64
      %p68 = scmp.eq.s32.totalorder %s16, 0
      %p69 = por %p67, %p68
      %p70 = scmp.ne.s32.totalorder %s62, %s64
      %p71 = scmp.eq.s32.totalorder %s21, 1
      %p72 = por %p70, %p71
      %p73 = scmp.ne.s32.totalorder %s64, %s65
      %p74 = scmp.eq.s32.totalorder %s21, 0
      %p75 = por %p73, %p74
      %p76 = scmp.ne.s32.totalorder %s64, %s65
      %p77 = scmp.eq.s32.totalorder %s22, 1
      %p78 = por %p76, %p77
      %p80 = scmp.ne.s32.totalorder %s65, %s79
      %p81 = scmp.eq.s32.totalorder %s22, 0
      %p82 = por %p80, %p81
      %s84 = sadd.s32 %s83, 1
      %p87 = scmp.eq.s32.totalorder %s16, 1
      %p88 = scmp.ne.s32.totalorder %s83, %s85
      %p89 = scmp.eq.s32.totalorder %s16, 0
      %p90 = por %p88, %p89
      %p91 = scmp.ne.s32.totalorder %s83, %s85
      %p92 = scmp.eq.s32.totalorder %s21, 1
      %p93 = por %p91, %p92
      %p94 = scmp.ne.s32.totalorder %s85, %s86
      %p95 = scmp.eq.s32.totalorder %s21, 0
      %p96 = por %p94, %p95
      %p97 = scmp.ne.s32.totalorder %s85, %s86
      %p98 = scmp.eq.s32.totalorder %s22, 1
      %p99 = por %p97, %p98
      %p101 = scmp.ne.s32.totalorder %s86, %s100
      %p102 = scmp.eq.s32.totalorder %s22, 0
      %p103 = por %p101, %p102
      %s105 = sadd.s32 %s104, 1
      %p108 = scmp.eq.s32.totalorder %s16, 1
      %p109 = scmp.ne.s32.totalorder %s104, %s106
      %p110 = scmp.eq.s32.totalorder %s16, 0
      %p111 = por %p109, %p110
      %p112 = scmp.ne.s32.totalorder %s104, %s106
      %p113 = scmp.eq.s32.totalorder %s21, 1
      %p114 = por %p112, %p113
      %p115 = scmp.ne.s32.totalorder %s106, %s107
      %p116 = scmp.eq.s32.totalorder %s21, 0
      %p117 = por %p115, %p116
      %p118 = scmp.ne.s32.totalorder %s106, %s107
      %p119 = scmp.eq.s32.totalorder %s22, 1
      %p120 = por %p118, %p119
      %p122 = scmp.ne.s32.totalorder %s107, %s121
      %p123 = scmp.eq.s32.totalorder %s22, 0
      %p124 = por %p122, %p123
      %s126 = sadd.s32 %s125, 1
      %p129 = scmp.eq.s32.totalorder %s16, 1
      %p130 = scmp.ne.s32.totalorder %s125, %s127
      %p131 = scmp.eq.s32.totalorder %s16, 0
      %p132 = por %p130, %p131
      %p133 = scmp.ne.s32.totalorder %s125, %s127
      %p134 = scmp.eq.s32.totalorder %s21, 1
      %p135 = por %p133, %p134
      %p136 = scmp.ne.s32.totalorder %s127, %s128
      %p137 = scmp.eq.s32.totalorder %s21, 0
      %p138 = por %p136, %p137
      %p139 = scmp.ne.s32.totalorder %s127, %s128
      %p140 = scmp.eq.s32.totalorder %s22, 1
      %p141 = por %p139, %p140
      %p143 = scmp.ne.s32.totalorder %s128, %s142
      %p144 = scmp.eq.s32.totalorder %s22, 0
      %p145 = por %p143, %p144
      %s146 = ssub.s32 %s24, %s31
      %p147 = scmp.eq.s32.totalorder %s146, 0
      %s149 = sadd.s32 %s148, 1
      %s150 = scalar_select %p147, %s148, %s149
      %p153 = pneg %p147
      %p154 = scmp.eq.s32.totalorder %s16, 1
      %p155 = por %p153, %p154
      %p156 = scmp.ne.s32.totalorder %s148, %s151
      %p157 = scmp.eq.s32.totalorder %s16, 0
      %p158 = por %p156, %p157
      %p159 = scmp.ne.s32.totalorder %s148, %s151
      %p160 = scmp.eq.s32.totalorder %s21, 1
      %p161 = por %p159, %p160
      %p162 = scmp.ne.s32.totalorder %s151, %s152
      %p163 = scmp.eq.s32.totalorder %s21, 0
      %p164 = por %p162, %p163
      %p165 = scmp.ne.s32.totalorder %s151, %s152
      %p166 = scmp.eq.s32.totalorder %s22, 1
      %p167 = por %p165, %p166
      %p169 = scmp.ne.s32.totalorder %s152, %s168
      %p170 = scmp.eq.s32.totalorder %s22, 0
      %p171 = por %p169, %p170
      %s172 = ssub.s32 %s24, %s31
      %p173 = scmp.eq.s32.totalorder %s172, 0
      %s175 = sadd.s32 %s174, 1
      %s176 = scalar_select %p173, %s174, %s175
      %p179 = pneg %p173
      %p180 = scmp.eq.s32.totalorder %s16, 1
      %p181 = por %p179, %p180
      %p182 = scmp.ne.s32.totalorder %s174, %s177
      %p183 = scmp.eq.s32.totalorder %s16, 0
      %p184 = por %p182, %p183
      %p185 = scmp.ne.s32.totalorder %s174, %s177
      %p186 = scmp.eq.s32.totalorder %s21, 1
      %p187 = por %p185, %p186
      %p188 = scmp.ne.s32.totalorder %s177, %s178
      %p189 = scmp.eq.s32.totalorder %s21, 0
      %p190 = por %p188, %p189
      %p191 = scmp.ne.s32.totalorder %s177, %s178
      %p192 = scmp.eq.s32.totalorder %s22, 1
      %p193 = por %p191, %p192
      %p195 = scmp.ne.s32.totalorder %s178, %s194
      %p196 = scmp.eq.s32.totalorder %s22, 0
      %p197 = por %p195, %p196
      %s198 = ssub.s32 %s23, %s35
      %s199 = ssub.s32 %s24, %s31
      %s200 = sor.u32 %s198, %s199
      %p201 = scmp.eq.s32.totalorder %s200, 0
      %s203 = sadd.s32 %s202, 1
      %s204 = scalar_select %p201, %s202, %s203
      %p207 = pneg %p201
      %p208 = scmp.eq.s32.totalorder %s16, 1
      %p209 = por %p207, %p208
      %p210 = scmp.ne.s32.totalorder %s202, %s205
      %p211 = scmp.eq.s32.totalorder %s16, 0
      %p212 = por %p210, %p211
      %p213 = scmp.ne.s32.totalorder %s202, %s205
      %p214 = scmp.eq.s32.totalorder %s21, 1
      %p215 = por %p213, %p214
      %p216 = scmp.ne.s32.totalorder %s205, %s206
      %p217 = scmp.eq.s32.totalorder %s21, 0
      %p218 = por %p216, %p217
      %p219 = scmp.ne.s32.totalorder %s205, %s206
      %p220 = scmp.eq.s32.totalorder %s22, 1
      %p221 = por %p219, %p220
      %p223 = scmp.ne.s32.totalorder %s206, %s222
      %p224 = scmp.eq.s32.totalorder %s22, 0
      %p225 = por %p223, %p224
      %p226 = scmp.le.s32.totalorder 1, %s16
      %p227 = scmp.lt.s32.totalorder %s16, 3
      %p228 = pnand %p226, %p227
      %p229 = pneg %p228
      // Predicated region
      $region9: #{tpu_custom_call.1} parent=5 // pred_check
        _
      $region10: #{tpu_custom_call.1} parent=5 // pred_check_branch
        %231 = sbr.rel (%p228) target = $region12
      $region11: #{tpu_custom_call.1} parent=5 // pred_region
        %s232 = ssub.s32 %s16, 1
        // Predicated region
        $region13: #{tpu_custom_call.1} parent=11 // pred_check
          %p233 = pneg %p54
        $region14: #{tpu_custom_call.1} parent=11 // pred_check_branch
          %235 = sbr.rel (%p233) target = $region16
        $region15: #{tpu_custom_call.1} parent=11 // pred_region
          %p236 = scmp.lt.s32.totalorder %s25, 0
          %s237 = scalar_select %p236, %s25, 0
          %s238 = smul.addr %s237, 8
          %s239 = scalar_lea.vmem %s0, %s238
        $region16: #{tpu_custom_call.1} parent=11 // pred_fallthru
          _
        // Predicated region
        $region17: #{tpu_custom_call.1} parent=11 // pred_check
          %p240 = pneg %p75
        $region18: #{tpu_custom_call.1} parent=11 // pred_check_branch
          %242 = sbr.rel (%p240) target = $region20
        $region19: #{tpu_custom_call.1} parent=11 // pred_region
          _
        $region20: #{tpu_custom_call.1} parent=11 // pred_fallthru
          _
        // Predicated region
        $region21: #{tpu_custom_call.1} parent=11 // pred_check
          %p243 = pneg %p96
        $region22: #{tpu_custom_call.1} parent=11 // pred_check_branch
          %245 = sbr.rel (%p243) target = $region24
        $region23: #{tpu_custom_call.1} parent=11 // pred_region
          _
        $region24: #{tpu_custom_call.1} parent=11 // pred_fallthru
          _
        // Predicated region
        $region25: #{tpu_custom_call.1} parent=11 // pred_check
          %p246 = pneg %p117
        $region26: #{tpu_custom_call.1} parent=11 // pred_check_branch
          %248 = sbr.rel (%p246) target = $region28
        $region27: #{tpu_custom_call.1} parent=11 // pred_region
          _
        $region28: #{tpu_custom_call.1} parent=11 // pred_fallthru
          _
        // Predicated region
        $region29: #{tpu_custom_call.1} parent=11 // pred_check
          %p249 = pneg %p138
        $region30: #{tpu_custom_call.1} parent=11 // pred_check_branch
          %251 = sbr.rel (%p249) target = $region32
        $region31: #{tpu_custom_call.1} parent=11 // pred_region
          _
        $region32: #{tpu_custom_call.1} parent=11 // pred_fallthru
          _
      $region12: #{tpu_custom_call.1} parent=5 // pred_fallthru
        _
      %p252 = scmp.lt.s32.totalorder %s16, 2
      // Predicated region
      $region33: #{tpu_custom_call.1} parent=5 // pred_check
        %p253 = pneg %p252
      $region34: #{tpu_custom_call.1} parent=5 // pred_check_branch
        %255 = sbr.rel (%p253) target = $region36
      $region35: #{tpu_custom_call.1} parent=5 // pred_region
        // Predicated region
        $region37: #{tpu_custom_call.1} parent=35 // pred_check
          %p256 = pneg %p158
        $region38: #{tpu_custom_call.1} parent=35 // pred_check_branch
          %258 = sbr.rel (%p256) target = $region40
        $region39: #{tpu_custom_call.1} parent=35 // pred_region
          %s259 = smul.u32 16, %s24
          %p260 = scmp.lt.s32.totalorder %s259, 31
          %s261 = scalar_select %p260, %s259, 31
          %s262 = smul.addr %s261, 8
          %s263 = scalar_lea.vmem %s5, %s262
          %s264 = smul.u32 16, %s24
        $region40: #{tpu_custom_call.1} parent=35 // pred_fallthru
          _
        // Predicated region
        $region41: #{tpu_custom_call.1} parent=35 // pred_check
          %p265 = pneg %p184
        $region42: #{tpu_custom_call.1} parent=35 // pred_check_branch
          %267 = sbr.rel (%p265) target = $region44
        $region43: #{tpu_custom_call.1} parent=35 // pred_region
          %p268 = scmp.lt.s32.totalorder %s24, 1
          %s269 = scalar_select %p268, %s24, 1
          %s270 = scalar_lea.vmem %s6, %s269
        $region44: #{tpu_custom_call.1} parent=35 // pred_fallthru
          _
      $region36: #{tpu_custom_call.1} parent=5 // pred_fallthru
        _
      %p271 = scmp.le.s32.totalorder 1, %s16
      %p272 = scmp.lt.s32.totalorder %s16, 3
      %p273 = pnand %p271, %p272
      %p274 = pneg %p273
      // Predicated region
      $region45: #{tpu_custom_call.1} parent=5 // pred_check
        _
      $region46: #{tpu_custom_call.1} parent=5 // pred_check_branch
        %276 = sbr.rel (%p273) target = $region48
      $region47: #{tpu_custom_call.1} parent=5 // pred_region
        %s277 = ssub.s32 %s16, 1
        %p278 = scmp.lt.s32.totalorder %s25, 0
        %s279 = scalar_select %p278, %s25, 0
        %s280 = smul.addr %s279, 8
        %s281 = scalar_lea.vmem %s0, %s280
        %p282 = pneg %p54
        %p283 = pneg %p51
        %p284 = pneg %p75
        %p285 = pneg %p72
        %p286 = pneg %p96
        %p287 = pneg %p93
        %p288 = pneg %p117
        %p289 = pneg %p114
        %p290 = pneg %p138
        %p291 = pneg %p135
        %s292 = smul.u32 16, %s26
        %p293 = scmp.lt.s32.totalorder %s292, 31
        %s294 = scalar_select %p293, %s292, 31
        %s295 = smul.addr %s294, 8
        %s296 = scalar_lea.vmem %s5, %s295
        %p297 = pneg %p164
        %p298 = pneg %p161
        %p299 = scmp.lt.s32.totalorder %s26, 1
        %s300 = scalar_select %p299, %s26, 1
        %s301 = scalar_lea.vmem %s6, %s300
        %p302 = pneg %p190
        %p303 = pneg %p187
        %p304 = pneg %p218
        %p305 = pneg %p215
        %s306 = sand.u32 %s205, 1
        %s307 = scalar_lea.sflag [#allocation4], %s306
        %s308 = sand.u32 %s205, 1
        %s309 = smul.addr %s308, 8
        %s310 = scalar_lea.vmem [#allocation3], %s309
        %p311 = scmp.lt.s32.totalorder %s25, 0
        %s312 = scalar_select %p311, %s25, 0
        %s313 = smul.addr %s312, 8
        %s314 = scalar_lea.vmem %s0, %s313
        %s315 = smul.u32 16, %s26
        %p316 = scmp.lt.s32.totalorder %s315, 31
        %s317 = scalar_select %p316, %s315, 31
        %s318 = smul.addr %s317, 8
        %s319 = scalar_lea.vmem %s5, %s318
        %s320 = smul.u32 16, %s26
        %p321 = scmp.lt.s32.totalorder %s26, 1
        %s322 = scalar_select %p321, %s26, 1
        %s323 = scalar_lea.vmem %s6, %s322
        %p324 = scmp.eq.s32.totalorder %s26, 0
        // Predicated region
        $region49: #{tpu_custom_call.1} parent=47 // pred_check
          %p325 = pneg %p324
        $region50: #{tpu_custom_call.1} parent=47 // pred_check_branch
          %327 = sbr.rel (%p325) target = $region52
        $region51: #{tpu_custom_call.1} parent=47 // pred_region
          %v328 = vld [vmem:[%s314] sm:$0xff]
          %v329 = vld [vmem:[%s1] sm:$0xff]
          %v330 = vld [vmem:[%s1 + $0x8] sm:$0xff]
          %v331 = vld [vmem:[%s1 + $0x10] sm:$0xff]
          %v332 = vld [vmem:[%s1 + $0x18] sm:$0xff]
          %v333 = vld [vmem:[%s2] sm:$0x1]
          %v335 = vperm.slane %v333, 0
          %vm337 = vcmask 261120
          %v339 = vsel %vm337, %v328, 0
          %v342 = vsel %vm337, %v329, 0
          %v345 = vsel %vm337, %v330, 0
          %v348 = vsel %vm337, %v331, 0
          %v351 = vsel %vm337, %v332, 0
          %353 = vmatpush.xpose.msra.mxu0 0.0
          %354 = vmatpush.xpose.msra.mxu0 0.0
          %355 = vmatpush.xpose.msra.mxu0 0.0
          %356 = vmatpush.xpose.msra.mxu0 0.0
          %357 = vmatpush.xpose.msra.mxu0 0.0
          %358 = vmatpush.xpose.msra.mxu0 0.0
          %359 = vmatpush.xpose.msra.mxu0 0.0
          %360 = vmatpush.xpose.msra.mxu0 0.0
          %361 = vmatpush.xpose.msra.mxu0 0.0
          %362 = vmatpush.xpose.msra.mxu0 0.0
          %363 = vmatpush.xpose.msra.mxu0 0.0
          %364 = vmatpush.xpose.msra.mxu0 0.0
          %365 = vmatpush.xpose.msra.mxu0 %v351
          %366 = vmatpush.xpose.msra.mxu0 %v348
          %367 = vmatpush.xpose.msra.mxu0 %v345
          %368 = vmatpush.xpose.msra.mxu0 %v342
          %369 = vmatmul.f32.gmra.mxu0 %v339
          %v370 = vpop.f32.mrf.mxu0
          %v371 = vadd.f32 %v335, %v370
          %372 = vdwg.mxu0
          %v373 = vmax.f32 %v371, 0.0
          %v374 = vsel %vm337, %v373, 0.0
          %375 = vadd.xlane.f32.xlu0 %v374
          %v376 = vpop.xlane.xlu0 %375
          %v377 = vrcp.pop 32.0
          %v378 = vmul.f32 32.0, %v377
          %v379 = vsub.f32 1.0, %v378
          %v380 = vmul.f32 %v377, %v379
          %v381 = vadd.f32 %v377, %v380
          %vm382 = vweird.f32 %v377
          %v383 = vsel %vm382, %v377, %v381
          %v384 = vmul.f32 %v376, %v383
          %v385 = vsub.f32 %v373, %v384
          %v386 = vmul.f32 %v385, %v385
          %v387 = vsel %vm337, %v386, 0.0
          %388 = vadd.xlane.f32.xlu0 %v387
          %v389 = vpop.xlane.xlu0 %388
          %v390 = vmul.f32 %v389, %v383
          %v391 = vadd.f32 %v390, 1e-05
          %v392 = vrsqrt.pop %v391
          %v393 = vmul.f32 %v392, %v391
          %v394 = vmul.f32 %v393, %v392
          %v395 = vmul.f32 0.5, %v394
          %v396 = vsub.f32 1.5, %v395
          %v397 = vmul.f32 %v392, %v396
          %vm398 = vweird.f32 %v391
          %vm399 = vweird.f32 %v392
          %vm400 = vmor %vm398, %vm399
          %v401 = vsel %vm400, %v392, %v397
          %v402 = vmul.f32 %v385, %v401
          %v403 = vld [vmem:[%s3] sm:$0x1]
          %v405 = vperm.slane %v403, 0
          %v407 = vmul.f32 %v402, %v405
          %v408 = vld [vmem:[%s4] sm:$0x1]
          %v410 = vperm.slane %v408, 0
          %v412 = vadd.f32 %v407, %v410
          %413 = vst.msk [vmem:[#allocation2] sm:$0xff] %vm337, %v412
        $region52: #{tpu_custom_call.1} parent=47 // pred_fallthru
          _
        %v414 = vld [vmem:[#allocation2] sm:$0xff]
        %v415 = vld [vmem:[%s319] sm:$0xff]
        %v416 = vld [vmem:[%s319 + $0x8] sm:$0xff]
        %v417 = vld [vmem:[%s319 + $0x10] sm:$0xff]
        %v418 = vld [vmem:[%s319 + $0x18] sm:$0xff]
        %v419 = vld [vmem:[%s319 + $0x20] sm:$0xff]
        %v420 = vld [vmem:[%s319 + $0x28] sm:$0xff]
        %v421 = vld [vmem:[%s319 + $0x30] sm:$0xff]
        %v422 = vld [vmem:[%s319 + $0x38] sm:$0xff]
        %v423 = vld [vmem:[%s319 + $0x40] sm:$0xff]
        %v424 = vld [vmem:[%s319 + $0x48] sm:$0xff]
        %v425 = vld [vmem:[%s319 + $0x50] sm:$0xff]
        %v426 = vld [vmem:[%s319 + $0x58] sm:$0xff]
        %v427 = vld [vmem:[%s319 + $0x60] sm:$0xff]
        %v428 = vld [vmem:[%s319 + $0x68] sm:$0xff]
        %v429 = vld [vmem:[%s319 + $0x70] sm:$0xff]
        %v430 = vld [vmem:[%s319 + $0x78] sm:$0xff]
        %v431 = vld [vmem:[%s323] sm:$0x1]
        %v433 = vperm.slane %v431, 0
        %vm435 = vcmask 261120
        %v437 = vsel %vm435, %v414, 0
        %v440 = vsel %vm435, %v415, 0
        %v443 = vsel %vm435, %v416, 0
        %v446 = vsel %vm435, %v417, 0
        %v449 = vsel %vm435, %v418, 0
        %v452 = vsel %vm435, %v419, 0
        %v455 = vsel %vm435, %v420, 0
        %v458 = vsel %vm435, %v421, 0
        %v461 = vsel %vm435, %v422, 0
        %v464 = vsel %vm435, %v423, 0
        %v467 = vsel %vm435, %v424, 0
        %v470 = vsel %vm435, %v425, 0
        %v473 = vsel %vm435, %v426, 0
        %v476 = vsel %vm435, %v427, 0
        %v479 = vsel %vm435, %v428, 0
        %v482 = vsel %vm435, %v429, 0
        %v485 = vsel %vm435, %v430, 0
        %487 = vmatpush.xpose.msra.mxu0 %v485
        %488 = vmatpush.xpose.msra.mxu0 %v482
        %489 = vmatpush.xpose.msra.mxu0 %v479
        %490 = vmatpush.xpose.msra.mxu0 %v476
        %491 = vmatpush.xpose.msra.mxu0 %v473
        %492 = vmatpush.xpose.msra.mxu0 %v470
        %493 = vmatpush.xpose.msra.mxu0 %v467
        %494 = vmatpush.xpose.msra.mxu0 %v464
        %495 = vmatpush.xpose.msra.mxu0 %v461
        %496 = vmatpush.xpose.msra.mxu0 %v458
        %497 = vmatpush.xpose.msra.mxu0 %v455
        %498 = vmatpush.xpose.msra.mxu0 %v452
        %499 = vmatpush.xpose.msra.mxu0 %v449
        %500 = vmatpush.xpose.msra.mxu0 %v446
        %501 = vmatpush.xpose.msra.mxu0 %v443
        %502 = vmatpush.xpose.msra.mxu0 %v440
        %503 = vmatmul.f32.gmra.mxu0 %v437
        %v504 = vpop.f32.mrf.mxu0
        %v505 = vadd.f32 %v433, %v504
        %506 = vdwg.mxu0
        %507 = vst [vmem:[%s310] sm:$0xff] %v505
        %s508 = sand.u32 %s205, 1
        %s509 = scalar_lea.sflag [#allocation4], %s508
        %s510 = sand.u32 %s205, 1
        %s511 = smul.addr %s510, 8
        %s512 = scalar_lea.vmem [#allocation3], %s511
        // Predicated region
        $region53: #{tpu_custom_call.1} parent=47 // pred_check
          %p513 = pneg %p215
        $region54: #{tpu_custom_call.1} parent=47 // pred_check_branch
          %515 = sbr.rel (%p513) target = $region56
        $region55: #{tpu_custom_call.1} parent=47 // pred_region
          %517 = vsyncadd %s509, 0
          %s518 = smul.addr %s25, 2
          %s519 = sadd.s32 %s26, %s518
          %s520 = smul.addr %s519, 8
          %s521 = scalar_lea.hbm %s7, %s520
          %s523 = sshll.u32 %s512, 4
          %s524 = int_to_ptr.vmem [resolvable:$true] %s523
          %s525 = sshll.u32 %s521, 4
          %s526 = int_to_ptr.hbm [resolvable:$true] %s525
          %528 = dma.vmem_to_hbm [thread:$0]  %s524, 128, %s526, %s509
        $region56: #{tpu_custom_call.1} parent=47 // pred_fallthru
          _
      $region48: #{tpu_custom_call.1} parent=5 // pred_fallthru
        _
      %p529 = scmp.le.s32.totalorder 2, %s16
      // Predicated region
      $region57: #{tpu_custom_call.1} parent=5 // pred_check
        %p530 = pneg %p529
      $region58: #{tpu_custom_call.1} parent=5 // pred_check_branch
        %532 = sbr.rel (%p530) target = $region60
      $region59: #{tpu_custom_call.1} parent=5 // pred_region
        %s533 = ssub.s32 %s16, 2
        // Predicated region
        $region61: #{tpu_custom_call.1} parent=59 // pred_check
          %p534 = pneg %p221
        $region62: #{tpu_custom_call.1} parent=59 // pred_check_branch
          %536 = sbr.rel (%p534) target = $region64
        $region63: #{tpu_custom_call.1} parent=59 // pred_region
          %s537 = sand.u32 %s206, 1
          %s538 = scalar_lea.sflag [#allocation4], %s537
          %s539 = sand.u32 %s206, 1
          %s540 = smul.addr %s539, 8
          %s541 = scalar_lea.vmem [#allocation3], %s540
          %543 = dma.done %s538, 128
        $region64: #{tpu_custom_call.1} parent=59 // pred_fallthru
          _
      $region60: #{tpu_custom_call.1} parent=5 // pred_fallthru
        _
    $region6: #{tpu_custom_call.1} parent=1 // loop_footer
      %s20 = sadd.s32 1, %s16
    $region7: #{tpu_custom_call.1} parent=1 // loop_footer_branch
      %15 = sbr.rel target = $region3
    $region8: #{tpu_custom_call.1} parent=1 // loop_exit
      _
    %544 = vsyncpa [#allocation4], 1
    %s545 = scalar_lea.sflag [#allocation4], 1
    %546 = vsyncpa %s545, 1

</llo_original>
